<compile_context>
chip_gen: v7x
topology: tpu7x:2x2x1
jax: 0.10.0
libtpu: 0.0.40
codegen_flags: <defaults>
</compile_context>

<pallas_src>
import functools

import jax
import jax.numpy as jnp
from jax import lax
from jax.experimental import pallas as pl
from jax.experimental.pallas import tpu as pltpu


def _text_attention_kernel(x_ref, gamma_ref, wqk_ref, wv_ref, wout_ref,
                           nullk_ref, nullv_ref, o_ref, *,
                           heads, dim_head, mask_self_value, bf16_softmax):
    n = x_ref.shape[1]
    sim_dtype = jnp.bfloat16 if bf16_softmax else jnp.float32

    # ---- RMSNorm (gamma_ref already holds gamma * sqrt(dim)) ----
    x = x_ref[0]                                                   # (N, dim) f32
    inv_l2 = lax.rsqrt(jnp.sum(x * x, axis=-1, keepdims=True) + 1e-24)
    normed = (x * inv_l2 * gamma_ref[...]).astype(jnp.bfloat16)    # (N, dim) bf16

    # ---- full-width projections: one K=dim matmul each (full MXU depth) ----
    # W_qk already has `scale` folded in, so q == k == scale * (normed @ W_qk).
    qk = jnp.dot(normed, wqk_ref[...], preferred_element_type=jnp.float32)
    v = jnp.dot(normed, wv_ref[...], preferred_element_type=jnp.float32)
    qk_b = qk.astype(jnp.bfloat16)                                 # MXU operand copy
    v_b = v.astype(jnp.bfloat16)
    nullk = nullk_ref[...]                                         # (heads, d) f32, scale folded
    nullv = nullv_ref[...]                                         # (heads, d) f32

    # ---- self-mask built once, reused by every head ----
    row = lax.broadcasted_iota(jnp.int32, (n, n), 0)
    col = lax.broadcasted_iota(jnp.int32, (n, n), 1)
    diag = row == col
    neg = jnp.asarray(mask_self_value, dtype=sim_dtype)

    outs = []
    for h in range(heads):                                         # static unroll
        sl = slice(h * dim_head, (h + 1) * dim_head)
        q = qk[:, sl]                                              # (N, d) f32 (pre-scaled)
        q_b = qk_b[:, sl]                                          # (N, d) bf16

        # -cdist(q, q, p=2) via quadratic expansion (cross term on the MXU).
        q_sq = jnp.sum(q * q, axis=-1, keepdims=True)              # (N, 1) f32
        qqt = lax.dot_general(q_b, q_b, (((1,), (1,)), ((), ())),
                              preferred_element_type=jnp.float32)  # (N, N) f32
        d2 = jnp.maximum(q_sq + q_sq.T - 2.0 * qqt, 0.0)
        sim = -jnp.sqrt(d2.astype(sim_dtype))                      # (N, N)
        sim = jnp.where(diag, neg, sim)                            # mask j == i

        # Null key/value column (prepended in the reference; implicit here).
        diff = q - nullk[h:h + 1, :]                               # (N, d) f32
        d2n = jnp.sum(diff * diff, axis=-1, keepdims=True)
        sim_null = -jnp.sqrt(jnp.maximum(d2n, 0.0))                # (N, 1) f32

        # Softmax over the implicit concat [null | main]; denominator in f32.
        m = jnp.maximum(jnp.max(sim, axis=-1, keepdims=True),
                        sim_null.astype(sim_dtype))
        e_main = jnp.exp(sim - m)                                  # (N, N) sim_dtype
        e_null = jnp.exp(sim_null - m.astype(jnp.float32))         # (N, 1) f32
        denom = jnp.sum(e_main, axis=-1, keepdims=True,
                        dtype=jnp.float32) + e_null
        inv_denom = 1.0 / denom                                    # exact; only (N, 1)

        pv = jnp.dot(e_main.astype(jnp.bfloat16), v_b[:, sl],
                     preferred_element_type=jnp.float32)           # (N, d)
        out_h = (pv + e_null * nullv[h:h + 1, :]) * inv_denom
        outs.append(out_h.astype(jnp.bfloat16))

    # ---- single fused output projection: contraction depth = heads*dim_head ----
    out_cat = jnp.concatenate(outs, axis=-1)                       # (N, dim_inner) bf16
    o_ref[0] = jnp.dot(out_cat, wout_ref[...],
                       preferred_element_type=jnp.float32).astype(o_ref.dtype)


def text_attention(encodings, gamma, w_qk, w_v, null_kv, w_out, *,
                   heads, dim_head, mask_self_value=-100.0,
                   bf16_softmax=True, vmem_limit_bytes=None):
    # TODO(synk): optional boolean padding `mask` argument of the PyTorch module
    # is not implemented here (mask=None path only).
    # TODO(synk): for long sequences (N >~ 1-2K, especially v7x's 64 MiB VMEM)
    # the (N, N) per-head similarity should be kv-tiled flash-style and/or the
    # head loop moved back onto a grid axis; typical text-conditioning lengths
    # (~77-512) fit comfortably, optionally with an explicit vmem_limit_bytes.
    # TODO(synk): when B == 1 on v7x, add a parallel q-row-tile grid axis so
    # both TensorCores are used; also consider bf16 encodings/output if the
    # surrounding model tolerates it (halves the dominant HBM traffic).
    B, N, dim = encodings.shape
    dim_inner = heads * dim_head
    scale = dim_head ** (-0.5)

    # Fold `scale` into the query/key side (W_qk and the null keys); pre-cast
    # MXU weight operands to bf16 (halves their one-time DMA traffic).
    w_qk_s = (w_qk * scale).astype(jnp.bfloat16)                   # (dim, dim_inner)
    w_v_b = w_v.astype(jnp.bfloat16)                               # (dim, dim_inner)
    w_out_b = w_out.astype(jnp.bfloat16)                           # (dim_inner, dim)
    null_k = (null_kv[0] * scale).astype(jnp.float32)              # (heads, dim_head)
    null_v = null_kv[1].astype(jnp.float32)                        # (heads, dim_head)
    gamma_scaled = (gamma * (dim ** 0.5)).reshape(1, dim).astype(jnp.float32)

    kernel = functools.partial(
        _text_attention_kernel, heads=heads, dim_head=dim_head,
        mask_self_value=mask_self_value, bf16_softmax=bf16_softmax)

    return pl.pallas_call(
        kernel,
        out_shape=jax.ShapeDtypeStruct((B, N, dim), jnp.float32),
        grid=(B,),
        in_specs=[
            pl.BlockSpec((1, N, dim), lambda b: (b, 0, 0)),        # encodings
            pl.BlockSpec((1, dim), lambda b: (0, 0)),              # gamma * sqrt(dim)
            pl.BlockSpec((dim, dim_inner), lambda b: (0, 0)),      # W_qk * scale (bf16)
            pl.BlockSpec((dim, dim_inner), lambda b: (0, 0)),      # W_v (bf16)
            pl.BlockSpec((dim_inner, dim), lambda b: (0, 0)),      # W_out (bf16)
            pl.BlockSpec((heads, dim_head), lambda b: (0, 0)),     # null keys * scale
            pl.BlockSpec((heads, dim_head), lambda b: (0, 0)),     # null values
        ],
        out_specs=pl.BlockSpec((1, N, dim), lambda b: (b, 0, 0)),
        compiler_params=pltpu.CompilerParams(
            dimension_semantics=("parallel",),
            vmem_limit_bytes=vmem_limit_bytes),
    )(encodings, gamma_scaled, w_qk_s, w_v_b, w_out_b, null_k, null_v)


def _reference(encodings, gamma, w_qk, w_v, null_kv, w_out, *, heads, dim_head,
               mask_self_value=-100.0):
    """Pure-JAX f32 reference reproducing the PyTorch forward (mask=None)."""
    B, N, dim = encodings.shape
    scale = dim_head ** (-0.5)
    l2 = jnp.sqrt(jnp.sum(encodings * encodings, axis=-1, keepdims=True))
    normed = encodings / jnp.maximum(l2, 1e-12) * (dim ** 0.5) * gamma
    qk = normed @ w_qk
    v = normed @ w_v
    qk = qk.reshape(B, N, heads, dim_head).transpose(0, 2, 1, 3).reshape(B * heads, N, dim_head)
    v = v.reshape(B, N, heads, dim_head).transpose(0, 2, 1, 3).reshape(B * heads, N, dim_head)
    q, k = qk, qk
    nk = jnp.tile(null_kv[0][None, :, None, :], (B, 1, 1, 1)).reshape(B * heads, 1, dim_head)
    nv = jnp.tile(null_kv[1][None, :, None, :], (B, 1, 1, 1)).reshape(B * heads, 1, dim_head)
    k = jnp.concatenate([nk, k], axis=-2)
    vv = jnp.concatenate([nv, v], axis=-2)
    d2 = (jnp.sum(q * q, -1)[:, :, None] + jnp.sum(k * k, -1)[:, None, :]
          - 2.0 * jnp.einsum('bid,bjd->bij', q, k))
    sim = -jnp.sqrt(jnp.maximum(d2, 0.0)) * scale
    self_mask = jnp.pad(jnp.eye(N, dtype=bool), ((0, 0), (1, 0)))
    sim = jnp.where(self_mask[None], mask_self_value, sim)
    attn = jax.nn.softmax(sim, axis=-1)
    out = jnp.einsum('bij,bjd->bid', attn, vv)
    out = out.reshape(B, heads, N, dim_head).transpose(0, 2, 1, 3).reshape(B, N, heads * dim_head)
    return out @ w_out


if __name__ == "__main__":
    B, N = 2, 8
    dim, heads, dim_head = 32, 2, 16
    dim_inner = heads * dim_head

    key = jax.random.PRNGKey(0)
    k1, k2, k3, k4, k5 = jax.random.split(key, 5)
    encodings = jax.random.normal(k1, (B, N, dim), dtype=jnp.float32)
    gamma = jnp.ones((dim,), dtype=jnp.float32)                       # RMSNorm.gamma init
    w_qk = jax.random.normal(k2, (dim, dim_inner), dtype=jnp.float32) * 0.05
    w_v = jax.random.normal(k3, (dim, dim_inner), dtype=jnp.float32) * 0.05
    null_kv = jax.random.normal(k4, (2, heads, dim_head), dtype=jnp.float32)
    w_out = jax.random.normal(k5, (dim_inner, dim), dtype=jnp.float32) * 0.05

    out = text_attention(encodings, gamma, w_qk, w_v, null_kv, w_out,
                         heads=heads, dim_head=dim_head)
    out = jax.block_until_ready(out)

    ref = _reference(encodings, gamma, w_qk, w_v, null_kv, w_out,
                     heads=heads, dim_head=dim_head)
    assert out.shape == (B, N, dim)
    # bf16 MXU operands + bf16 similarity/exp (f32 stats) -> loosened tolerance.
    assert jnp.allclose(out, ref, atol=1e-2, rtol=1e-2), (
        float(jnp.max(jnp.abs(out - ref))))

    print("KERNEL_OK")
</pallas_src>

<mosaic_0001>
module attributes {stable_mosaic.version = 11 : i64} {
  func.func @_text_attention_kernel(%arg0: i32, %arg1: memref<1x8x32xf32, #tpu.memory_space<vmem>>, %arg2: memref<1x32xf32, #tpu.memory_space<vmem>>, %arg3: memref<32x32xbf16, #tpu.memory_space<vmem>>, %arg4: memref<32x32xbf16, #tpu.memory_space<vmem>>, %arg5: memref<32x32xbf16, #tpu.memory_space<vmem>>, %arg6: memref<2x16xf32, #tpu.memory_space<vmem>>, %arg7: memref<2x16xf32, #tpu.memory_space<vmem>>, %arg8: memref<1x8x32xf32, #tpu.memory_space<vmem>>) attributes {dimension_semantics = [#tpu.dimension_semantics<parallel>], iteration_bounds = array<i64: 2>, scalar_prefetch = 0 : i64, scratch_operands = 0 : i64, tpu.core_type = #tpu.core_type<tc>, window_params = [{transform_indices = @transform_0, window_bounds = array<i64: 1, 8, 32>}, {pipeline_mode = #tpu.pipeline_mode<synchronous>, transform_indices = @transform_1, window_bounds = array<i64: 1, 32>}, {pipeline_mode = #tpu.pipeline_mode<synchronous>, transform_indices = @transform_2, window_bounds = array<i64: 32, 32>}, {pipeline_mode = #tpu.pipeline_mode<synchronous>, transform_indices = @transform_3, window_bounds = array<i64: 32, 32>}, {pipeline_mode = #tpu.pipeline_mode<synchronous>, transform_indices = @transform_4, window_bounds = array<i64: 32, 32>}, {pipeline_mode = #tpu.pipeline_mode<synchronous>, transform_indices = @transform_5, window_bounds = array<i64: 2, 16>}, {pipeline_mode = #tpu.pipeline_mode<synchronous>, transform_indices = @transform_6, window_bounds = array<i64: 2, 16>}, {transform_indices = @transform_7, window_bounds = array<i64: 1, 8, 32>}]} {
    %c0 = arith.constant 0 : index
    %c0_0 = arith.constant 0 : index
    %c0_1 = arith.constant 0 : index
    %0 = vector.load %arg1[%c0, %c0_0, %c0_1] : memref<1x8x32xf32, #tpu.memory_space<vmem>>, vector<1x8x32xf32>
    %1 = vector.shape_cast %0 : vector<1x8x32xf32> to vector<8x32xf32>
    %2 = arith.mulf %1, %1 : vector<8x32xf32>
    %cst = arith.constant dense<0.000000e+00> : vector<8xf32>
    %3 = vector.multi_reduction <add>, %2, %cst [1] : vector<8x32xf32> to vector<8xf32>
    %4 = vector.shape_cast %3 : vector<8xf32> to vector<8x1xf32>
    %cst_2 = arith.constant 1.000000e-24 : f32
    %5 = vector.broadcast %cst_2 : f32 to vector<8x1xf32>
    %6 = arith.addf %4, %5 : vector<8x1xf32>
    %7 = math.rsqrt %6 : vector<8x1xf32>
    %8 = vector.broadcast %7 : vector<8x1xf32> to vector<8x32xf32>
    %9 = arith.mulf %1, %8 : vector<8x32xf32>
    %c0_3 = arith.constant 0 : index
    %c0_4 = arith.constant 0 : index
    %10 = vector.load %arg2[%c0_3, %c0_4] : memref<1x32xf32, #tpu.memory_space<vmem>>, vector<1x32xf32>
    %11 = vector.broadcast %10 : vector<1x32xf32> to vector<8x32xf32>
    %12 = arith.mulf %9, %11 : vector<8x32xf32>
    %13 = arith.truncf %12 : vector<8x32xf32> to vector<8x32xbf16>
    %c0_5 = arith.constant 0 : index
    %c0_6 = arith.constant 0 : index
    %14 = vector.load %arg3[%c0_5, %c0_6] : memref<32x32xbf16, #tpu.memory_space<vmem>>, vector<32x32xbf16>
    %cst_7 = arith.constant dense<0.000000e+00> : vector<8x32xf32>
    %15 = tpu.matmul %13, %14, %cst_7 {dimension_numbers = #tpu.dot_dimension_numbers<[1], [0], [0], [1], [0, 0, 1, 1], [], []>} : vector<8x32xbf16>, vector<32x32xbf16>, vector<8x32xf32> -> vector<8x32xf32>
    %c0_8 = arith.constant 0 : index
    %c0_9 = arith.constant 0 : index
    %16 = vector.load %arg4[%c0_8, %c0_9] : memref<32x32xbf16, #tpu.memory_space<vmem>>, vector<32x32xbf16>
    %cst_10 = arith.constant dense<0.000000e+00> : vector<8x32xf32>
    %17 = tpu.matmul %13, %16, %cst_10 {dimension_numbers = #tpu.dot_dimension_numbers<[1], [0], [0], [1], [0, 0, 1, 1], [], []>} : vector<8x32xbf16>, vector<32x32xbf16>, vector<8x32xf32> -> vector<8x32xf32>
    %18 = arith.truncf %15 : vector<8x32xf32> to vector<8x32xbf16>
    %19 = arith.truncf %17 : vector<8x32xf32> to vector<8x32xbf16>
    %c0_11 = arith.constant 0 : index
    %c0_12 = arith.constant 0 : index
    %20 = vector.load %arg6[%c0_11, %c0_12] : memref<2x16xf32, #tpu.memory_space<vmem>>, vector<2x16xf32>
    %c0_13 = arith.constant 0 : index
    %c0_14 = arith.constant 0 : index
    %21 = vector.load %arg7[%c0_13, %c0_14] : memref<2x16xf32, #tpu.memory_space<vmem>>, vector<2x16xf32>
    %22 = tpu.iota {dimensions = array<i32: 0>} : vector<8x8xi32>
    %23 = tpu.iota {dimensions = array<i32: 1>} : vector<8x8xi32>
    %24 = arith.cmpi eq, %22, %23 : vector<8x8xi32>
    %25 = vector.extract_strided_slice %15 {offsets = [0, 0], sizes = [8, 16], strides = [1, 1]} : vector<8x32xf32> to vector<8x16xf32>
    %26 = vector.extract_strided_slice %18 {offsets = [0, 0], sizes = [8, 16], strides = [1, 1]} : vector<8x32xbf16> to vector<8x16xbf16>
    %27 = arith.mulf %25, %25 : vector<8x16xf32>
    %cst_15 = arith.constant dense<0.000000e+00> : vector<8xf32>
    %28 = vector.multi_reduction <add>, %27, %cst_15 [1] : vector<8x16xf32> to vector<8xf32>
    %29 = vector.shape_cast %28 : vector<8xf32> to vector<8x1xf32>
    %cst_16 = arith.constant dense<0.000000e+00> : vector<8x8xf32>
    %30 = tpu.matmul %26, %26, %cst_16 {dimension_numbers = #tpu.dot_dimension_numbers<[1], [1], [0], [0], [0, 0, 1, 0], [], []>} : vector<8x16xbf16>, vector<8x16xbf16>, vector<8x8xf32> -> vector<8x8xf32>
    %31 = tpu.transpose %29, [1, 0] : vector<8x1xf32> -> vector<1x8xf32>
    %32 = vector.broadcast %29 : vector<8x1xf32> to vector<8x8xf32>
    %33 = vector.broadcast %31 : vector<1x8xf32> to vector<8x8xf32>
    %34 = arith.addf %32, %33 : vector<8x8xf32>
    %cst_17 = arith.constant 2.000000e+00 : f32
    %35 = vector.broadcast %cst_17 : f32 to vector<8x8xf32>
    %36 = arith.mulf %35, %30 : vector<8x8xf32>
    %37 = arith.subf %34, %36 : vector<8x8xf32>
    %cst_18 = arith.constant 0.000000e+00 : f32
    %38 = vector.broadcast %cst_18 : f32 to vector<8x8xf32>
    %39 = arith.maximumf %37, %38 : vector<8x8xf32>
    %40 = arith.truncf %39 : vector<8x8xf32> to vector<8x8xbf16>
    %41 = math.sqrt %40 : vector<8x8xbf16>
    %cst_19 = arith.constant 0.000000e+00 : bf16
    %42 = vector.broadcast %cst_19 : bf16 to vector<8x8xbf16>
    %43 = arith.subf %42, %41 : vector<8x8xbf16>
    %cst_20 = arith.constant -1.000000e+02 : bf16
    %44 = vector.broadcast %cst_20 : bf16 to vector<8x8xbf16>
    %45 = arith.select %24, %44, %43 : vector<8x8xi1>, vector<8x8xbf16>
    %46 = vector.extract_strided_slice %20 {offsets = [0, 0], sizes = [1, 16], strides = [1, 1]} : vector<2x16xf32> to vector<1x16xf32>
    %47 = vector.broadcast %46 : vector<1x16xf32> to vector<8x16xf32>
    %48 = arith.subf %25, %47 : vector<8x16xf32>
    %49 = arith.mulf %48, %48 : vector<8x16xf32>
    %cst_21 = arith.constant dense<0.000000e+00> : vector<8xf32>
    %50 = vector.multi_reduction <add>, %49, %cst_21 [1] : vector<8x16xf32> to vector<8xf32>
    %51 = vector.shape_cast %50 : vector<8xf32> to vector<8x1xf32>
    %cst_22 = arith.constant 0.000000e+00 : f32
    %52 = vector.broadcast %cst_22 : f32 to vector<8x1xf32>
    %53 = arith.maximumf %51, %52 : vector<8x1xf32>
    %54 = math.sqrt %53 : vector<8x1xf32>
    %cst_23 = arith.constant 0.000000e+00 : f32
    %55 = vector.broadcast %cst_23 : f32 to vector<8x1xf32>
    %56 = arith.subf %55, %54 : vector<8x1xf32>
    %cst_24 = arith.constant dense<0xFF80> : vector<8xbf16>
    %57 = vector.multi_reduction <maximumf>, %45, %cst_24 [1] : vector<8x8xbf16> to vector<8xbf16>
    %58 = vector.shape_cast %57 : vector<8xbf16> to vector<8x1xbf16>
    %59 = arith.truncf %56 : vector<8x1xf32> to vector<8x1xbf16>
    %60 = arith.maximumf %58, %59 : vector<8x1xbf16>
    %61 = vector.broadcast %60 : vector<8x1xbf16> to vector<8x8xbf16>
    %62 = arith.subf %45, %61 : vector<8x8xbf16>
    %63 = math.exp %62 : vector<8x8xbf16>
    %64 = arith.extf %60 : vector<8x1xbf16> to vector<8x1xf32>
    %65 = arith.subf %56, %64 : vector<8x1xf32>
    %66 = math.exp %65 : vector<8x1xf32>
    %67 = arith.extf %63 : vector<8x8xbf16> to vector<8x8xf32>
    %cst_25 = arith.constant dense<0.000000e+00> : vector<8xf32>
    %68 = vector.multi_reduction <add>, %67, %cst_25 [1] : vector<8x8xf32> to vector<8xf32>
    %69 = vector.shape_cast %68 : vector<8xf32> to vector<8x1xf32>
    %70 = arith.addf %69, %66 : vector<8x1xf32>
    %cst_26 = arith.constant 1.000000e+00 : f32
    %71 = vector.broadcast %cst_26 : f32 to vector<8x1xf32>
    %72 = arith.divf %71, %70 : vector<8x1xf32>
    %73 = vector.extract_strided_slice %19 {offsets = [0, 0], sizes = [8, 16], strides = [1, 1]} : vector<8x32xbf16> to vector<8x16xbf16>
    %cst_27 = arith.constant dense<0.000000e+00> : vector<8x16xf32>
    %74 = tpu.matmul %63, %73, %cst_27 {dimension_numbers = #tpu.dot_dimension_numbers<[1], [0], [0], [1], [0, 0, 1, 1], [], []>} : vector<8x8xbf16>, vector<8x16xbf16>, vector<8x16xf32> -> vector<8x16xf32>
    %75 = vector.extract_strided_slice %21 {offsets = [0, 0], sizes = [1, 16], strides = [1, 1]} : vector<2x16xf32> to vector<1x16xf32>
    %76 = vector.broadcast %66 : vector<8x1xf32> to vector<8x16xf32>
    %77 = vector.broadcast %75 : vector<1x16xf32> to vector<8x16xf32>
    %78 = arith.mulf %76, %77 : vector<8x16xf32>
    %79 = arith.addf %74, %78 : vector<8x16xf32>
    %80 = vector.broadcast %72 : vector<8x1xf32> to vector<8x16xf32>
    %81 = arith.mulf %79, %80 : vector<8x16xf32>
    %82 = arith.truncf %81 : vector<8x16xf32> to vector<8x16xbf16>
    %83 = vector.extract_strided_slice %15 {offsets = [0, 16], sizes = [8, 16], strides = [1, 1]} : vector<8x32xf32> to vector<8x16xf32>
    %84 = vector.extract_strided_slice %18 {offsets = [0, 16], sizes = [8, 16], strides = [1, 1]} : vector<8x32xbf16> to vector<8x16xbf16>
    %85 = arith.mulf %83, %83 : vector<8x16xf32>
    %cst_28 = arith.constant dense<0.000000e+00> : vector<8xf32>
    %86 = vector.multi_reduction <add>, %85, %cst_28 [1] : vector<8x16xf32> to vector<8xf32>
    %87 = vector.shape_cast %86 : vector<8xf32> to vector<8x1xf32>
    %cst_29 = arith.constant dense<0.000000e+00> : vector<8x8xf32>
    %88 = tpu.matmul %84, %84, %cst_29 {dimension_numbers = #tpu.dot_dimension_numbers<[1], [1], [0], [0], [0, 0, 1, 0], [], []>} : vector<8x16xbf16>, vector<8x16xbf16>, vector<8x8xf32> -> vector<8x8xf32>
    %89 = tpu.transpose %87, [1, 0] : vector<8x1xf32> -> vector<1x8xf32>
    %90 = vector.broadcast %87 : vector<8x1xf32> to vector<8x8xf32>
    %91 = vector.broadcast %89 : vector<1x8xf32> to vector<8x8xf32>
    %92 = arith.addf %90, %91 : vector<8x8xf32>
    %cst_30 = arith.constant 2.000000e+00 : f32
    %93 = vector.broadcast %cst_30 : f32 to vector<8x8xf32>
    %94 = arith.mulf %93, %88 : vector<8x8xf32>
    %95 = arith.subf %92, %94 : vector<8x8xf32>
    %cst_31 = arith.constant 0.000000e+00 : f32
    %96 = vector.broadcast %cst_31 : f32 to vector<8x8xf32>
    %97 = arith.maximumf %95, %96 : vector<8x8xf32>
    %98 = arith.truncf %97 : vector<8x8xf32> to vector<8x8xbf16>
    %99 = math.sqrt %98 : vector<8x8xbf16>
    %cst_32 = arith.constant 0.000000e+00 : bf16
    %100 = vector.broadcast %cst_32 : bf16 to vector<8x8xbf16>
    %101 = arith.subf %100, %99 : vector<8x8xbf16>
    %cst_33 = arith.constant -1.000000e+02 : bf16
    %102 = vector.broadcast %cst_33 : bf16 to vector<8x8xbf16>
    %103 = arith.select %24, %102, %101 : vector<8x8xi1>, vector<8x8xbf16>
    %104 = vector.extract_strided_slice %20 {offsets = [1, 0], sizes = [1, 16], strides = [1, 1]} : vector<2x16xf32> to vector<1x16xf32>
    %105 = vector.broadcast %104 : vector<1x16xf32> to vector<8x16xf32>
    %106 = arith.subf %83, %105 : vector<8x16xf32>
    %107 = arith.mulf %106, %106 : vector<8x16xf32>
    %cst_34 = arith.constant dense<0.000000e+00> : vector<8xf32>
    %108 = vector.multi_reduction <add>, %107, %cst_34 [1] : vector<8x16xf32> to vector<8xf32>
    %109 = vector.shape_cast %108 : vector<8xf32> to vector<8x1xf32>
    %cst_35 = arith.constant 0.000000e+00 : f32
    %110 = vector.broadcast %cst_35 : f32 to vector<8x1xf32>
    %111 = arith.maximumf %109, %110 : vector<8x1xf32>
    %112 = math.sqrt %111 : vector<8x1xf32>
    %cst_36 = arith.constant 0.000000e+00 : f32
    %113 = vector.broadcast %cst_36 : f32 to vector<8x1xf32>
    %114 = arith.subf %113, %112 : vector<8x1xf32>
    %cst_37 = arith.constant dense<0xFF80> : vector<8xbf16>
    %115 = vector.multi_reduction <maximumf>, %103, %cst_37 [1] : vector<8x8xbf16> to vector<8xbf16>
    %116 = vector.shape_cast %115 : vector<8xbf16> to vector<8x1xbf16>
    %117 = arith.truncf %114 : vector<8x1xf32> to vector<8x1xbf16>
    %118 = arith.maximumf %116, %117 : vector<8x1xbf16>
    %119 = vector.broadcast %118 : vector<8x1xbf16> to vector<8x8xbf16>
    %120 = arith.subf %103, %119 : vector<8x8xbf16>
    %121 = math.exp %120 : vector<8x8xbf16>
    %122 = arith.extf %118 : vector<8x1xbf16> to vector<8x1xf32>
    %123 = arith.subf %114, %122 : vector<8x1xf32>
    %124 = math.exp %123 : vector<8x1xf32>
    %125 = arith.extf %121 : vector<8x8xbf16> to vector<8x8xf32>
    %cst_38 = arith.constant dense<0.000000e+00> : vector<8xf32>
    %126 = vector.multi_reduction <add>, %125, %cst_38 [1] : vector<8x8xf32> to vector<8xf32>
    %127 = vector.shape_cast %126 : vector<8xf32> to vector<8x1xf32>
    %128 = arith.addf %127, %124 : vector<8x1xf32>
    %cst_39 = arith.constant 1.000000e+00 : f32
    %129 = vector.broadcast %cst_39 : f32 to vector<8x1xf32>
    %130 = arith.divf %129, %128 : vector<8x1xf32>
    %131 = vector.extract_strided_slice %19 {offsets = [0, 16], sizes = [8, 16], strides = [1, 1]} : vector<8x32xbf16> to vector<8x16xbf16>
    %cst_40 = arith.constant dense<0.000000e+00> : vector<8x16xf32>
    %132 = tpu.matmul %121, %131, %cst_40 {dimension_numbers = #tpu.dot_dimension_numbers<[1], [0], [0], [1], [0, 0, 1, 1], [], []>} : vector<8x8xbf16>, vector<8x16xbf16>, vector<8x16xf32> -> vector<8x16xf32>
    %133 = vector.extract_strided_slice %21 {offsets = [1, 0], sizes = [1, 16], strides = [1, 1]} : vector<2x16xf32> to vector<1x16xf32>
    %134 = vector.broadcast %124 : vector<8x1xf32> to vector<8x16xf32>
    %135 = vector.broadcast %133 : vector<1x16xf32> to vector<8x16xf32>
    %136 = arith.mulf %134, %135 : vector<8x16xf32>
    %137 = arith.addf %132, %136 : vector<8x16xf32>
    %138 = vector.broadcast %130 : vector<8x1xf32> to vector<8x16xf32>
    %139 = arith.mulf %137, %138 : vector<8x16xf32>
    %140 = arith.truncf %139 : vector<8x16xf32> to vector<8x16xbf16>
    %141 = tpu.concatenate %82, %140 in 1 : vector<8x16xbf16>, vector<8x16xbf16> -> vector<8x32xbf16>
    %c0_41 = arith.constant 0 : index
    %c0_42 = arith.constant 0 : index
    %142 = vector.load %arg5[%c0_41, %c0_42] : memref<32x32xbf16, #tpu.memory_space<vmem>>, vector<32x32xbf16>
    %cst_43 = arith.constant dense<0.000000e+00> : vector<8x32xf32>
    %143 = tpu.matmul %141, %142, %cst_43 {dimension_numbers = #tpu.dot_dimension_numbers<[1], [0], [0], [1], [0, 0, 1, 1], [], []>} : vector<8x32xbf16>, vector<32x32xbf16>, vector<8x32xf32> -> vector<8x32xf32>
    %c0_44 = arith.constant 0 : index
    %c0_45 = arith.constant 0 : index
    %c0_46 = arith.constant 0 : index
    %144 = vector.load %arg8[%c0_44, %c0_45, %c0_46] : memref<1x8x32xf32, #tpu.memory_space<vmem>>, vector<1x8x32xf32>
    %145 = vector.shape_cast %144 : vector<1x8x32xf32> to vector<8x32xf32>
    %146 = vector.shape_cast %143 : vector<8x32xf32> to vector<1x8x32xf32>
    tpu.vector_store %arg8[%c0_44, %c0_45, %c0_46], %146 {strides = array<i32>} : memref<1x8x32xf32, #tpu.memory_space<vmem>>, vector<1x8x32xf32>,
    return
  }
  func.func @transform_0(%arg0: i32) -> (i32, i32, i32) {
    %c0_i32 = arith.constant 0 : i32
    %c0_i32_0 = arith.constant 0 : i32
    %c0_i32_1 = arith.constant 0 : i32
    return %arg0, %c0_i32, %c0_i32_0 : i32, i32, i32
  }
  func.func @transform_1(%arg0: i32) -> (i32, i32) {
    %c0_i32 = arith.constant 0 : i32
    %c0_i32_0 = arith.constant 0 : i32
    %c0_i32_1 = arith.constant 0 : i32
    return %c0_i32, %c0_i32_0 : i32, i32
  }
  func.func @transform_2(%arg0: i32) -> (i32, i32) {
    %c0_i32 = arith.constant 0 : i32
    %c0_i32_0 = arith.constant 0 : i32
    %c0_i32_1 = arith.constant 0 : i32
    return %c0_i32, %c0_i32_0 : i32, i32
  }
  func.func @transform_3(%arg0: i32) -> (i32, i32) {
    %c0_i32 = arith.constant 0 : i32
    %c0_i32_0 = arith.constant 0 : i32
    %c0_i32_1 = arith.constant 0 : i32
    return %c0_i32, %c0_i32_0 : i32, i32
  }
  func.func @transform_4(%arg0: i32) -> (i32, i32) {
    %c0_i32 = arith.constant 0 : i32
    %c0_i32_0 = arith.constant 0 : i32
    %c0_i32_1 = arith.constant 0 : i32
    return %c0_i32, %c0_i32_0 : i32, i32
  }
  func.func @transform_5(%arg0: i32) -> (i32, i32) {
    %c0_i32 = arith.constant 0 : i32
    %c0_i32_0 = arith.constant 0 : i32
    %c0_i32_1 = arith.constant 0 : i32
    return %c0_i32, %c0_i32_0 : i32, i32
  }
  func.func @transform_6(%arg0: i32) -> (i32, i32) {
    %c0_i32 = arith.constant 0 : i32
    %c0_i32_0 = arith.constant 0 : i32
    %c0_i32_1 = arith.constant 0 : i32
    return %c0_i32, %c0_i32_0 : i32, i32
  }
  func.func @transform_7(%arg0: i32) -> (i32, i32, i32) {
    %c0_i32 = arith.constant 0 : i32
    %c0_i32_0 = arith.constant 0 : i32
    %c0_i32_1 = arith.constant 0 : i32
    return %arg0, %c0_i32, %c0_i32_0 : i32, i32, i32
  }
}

</mosaic_0001>

<llo_original>
// kernel: tpu_custom_call.1
$region0: #{tpu_custom_call.1}
  #allocation0 [shape = 'u32[]', space=smem, size = 0x4, offset = 0x4, fixed_abs, tag = 'smem constant byte address 0x4 - core index']
  #allocation1 [shape = 'u32[144,128]{1,0:T(1,128)}', space=vmem, size = 0x12000, scoped, tag = 'internal scratch']
  %s0 = inlined_call_operand.hbm [shape: f32[2,8,32], index: 0, kind: input, shape index: {}]
  %s1 = inlined_call_operand.vmem [shape: f32[1,32], index: 1, kind: input, shape index: {}]
  %s2 = inlined_call_operand.hbm [shape: bf16[32,32], index: 2, kind: input, shape index: {}]
  %s3 = inlined_call_operand.hbm [shape: bf16[32,32], index: 3, kind: input, shape index: {}]
  %s4 = inlined_call_operand.hbm [shape: bf16[32,32], index: 4, kind: input, shape index: {}]
  %s5 = inlined_call_operand.vmem [shape: f32[2,16], index: 5, kind: input, shape index: {}]
  %s6 = inlined_call_operand.vmem [shape: f32[2,16], index: 6, kind: input, shape index: {}]
  %s7 = inlined_call_operand.hbm [shape: f32[2,8,32], index: 7, kind: output, shape index: {}]
  %s8 = sld [smem:[#allocation0]]
  $region77: #{tpu_custom_call.1} parent=0
    _
  %s10 = ssub.s32 1, %s8
  %s11 = scalar_select 0, %s10, %s8
  $region1: #{tpu_custom_call.1} parent=0
    #allocation2 [shape = 'u8[8192]{0}', space=vmem, size = 0x2000, scoped, tag = 'input window, operand 0']
    #allocation3 [shape = 's32[2]{0}', space=sflag, size = 0x8, scoped, tag = 'scoped memory for tpu_custom_call.1']
    #allocation4 [shape = 's32[2]{0}', space=sflag, size = 0x8, scoped, tag = 'scoped memory for tpu_custom_call.1']
    #allocation5 [shape = 'u8[8192]{0}', space=vmem, size = 0x2000, scoped, tag = 'input window, operand 2, single buffered']
    #allocation6 [shape = 's32[1]{0}', space=sflag, size = 0x4, scoped, tag = 'scoped memory for tpu_custom_call.1']
    #allocation7 [shape = 'u8[8192]{0}', space=vmem, size = 0x2000, scoped, tag = 'input window, operand 3, single buffered']
    #allocation8 [shape = 'u8[8192]{0}', space=vmem, size = 0x2000, scoped, tag = 'input window, operand 4, single buffered']
    #allocation9 [shape = 's32[1]{0}', space=sflag, size = 0x4, scoped, tag = 'scoped memory for tpu_custom_call.1']
    #allocation10 [shape = 'u8[8192]{0}', space=vmem, size = 0x2000, scoped, tag = 'output window, operand 0']
    %12 = vsyncpa [#allocation3], 0
    %s13 = scalar_lea.sflag [#allocation3], 1
    %14 = vsyncpa %s13, 0
    %15 = vsyncpa [#allocation6], 0
    %16 = vsyncpa [#allocation9], 0
    %17 = vsyncpa [#allocation4], 0
    %s18 = scalar_lea.sflag [#allocation4], 1
    %19 = vsyncpa %s18, 0
    loop: start=0, step=1, limit=4
    $region2: #{tpu_custom_call.1} parent=1 // loop_pre_header
      _
    $region3: #{tpu_custom_call.1} parent=1 // loop_header
      %s21 = sphi 0, %s25
      %p22 = scmp.ge.s32.totalorder %s21, 4
      %s31 = sphi 0, %s33
      %s34 = sphi 0, %s31
      %s35 = sphi 0, %s34
      %s51 = sphi 0, %s35
      %s55 = sphi 0, %s55
      %s57 = sphi 0, %s55
      %s58 = sphi 0, %s57
      %s72 = sphi 0, %s58
      %s76 = sphi 0, %s76
      %s78 = sphi 0, %s76
      %s79 = sphi 0, %s78
      %s93 = sphi 0, %s79
      %s97 = sphi 0, %s97
      %s99 = sphi 0, %s97
      %s100 = sphi 0, %s99
      %s114 = sphi 0, %s100
      %s118 = sphi 0, %s118
      %s120 = sphi 0, %s118
      %s121 = sphi 0, %s120
      %s135 = sphi 0, %s121
      %s139 = sphi 0, %s139
      %s141 = sphi 0, %s139
      %s142 = sphi 0, %s141
      %s156 = sphi 0, %s142
      %s160 = sphi 0, %s160
      %s162 = sphi 0, %s160
      %s163 = sphi 0, %s162
      %s177 = sphi 0, %s163
      %s183 = sphi 0, %s185
      %s186 = sphi 0, %s183
      %s187 = sphi 0, %s186
      %s203 = sphi 0, %s187
    $region4: #{tpu_custom_call.1} parent=1 // loop_header_branch
      %24 = sbr.rel (%p22) target = $region8
    $region5: #{tpu_custom_call.1} parent=1 // loop_body
      %s26 = ssub.s32 %s21, 1
      %s27 = ssub.s32 %s21, 2
      %s28 = sadd.s32 %s21, 1
      %s29 = ssub.s32 %s21, %s28
      %p30 = scmp.eq.s32.totalorder %s29, 0
      %s32 = sadd.s32 %s31, 1
      %s33 = scalar_select %p30, %s31, %s32
      %p36 = pneg %p30
      %p37 = scmp.eq.s32.totalorder %s21, 1
      %p38 = por %p36, %p37
      %p39 = scmp.ne.s32.totalorder %s31, %s34
      %p40 = scmp.eq.s32.totalorder %s21, 0
      %p41 = por %p39, %p40
      %p42 = scmp.ne.s32.totalorder %s31, %s34
      %p43 = scmp.eq.s32.totalorder %s26, 1
      %p44 = por %p42, %p43
      %p45 = scmp.ne.s32.totalorder %s34, %s35
      %p46 = scmp.eq.s32.totalorder %s26, 0
      %p47 = por %p45, %p46
      %p48 = scmp.ne.s32.totalorder %s34, %s35
      %p49 = scmp.eq.s32.totalorder %s27, 1
      %p50 = por %p48, %p49
      %p52 = scmp.ne.s32.totalorder %s35, %s51
      %p53 = scmp.eq.s32.totalorder %s27, 0
      %p54 = por %p52, %p53
      %s56 = sadd.s32 %s55, 1
      %p59 = scmp.eq.s32.totalorder %s21, 1
      %p60 = scmp.ne.s32.totalorder %s55, %s57
      %p61 = scmp.eq.s32.totalorder %s21, 0
      %p62 = por %p60, %p61
      %p63 = scmp.ne.s32.totalorder %s55, %s57
      %p64 = scmp.eq.s32.totalorder %s26, 1
      %p65 = por %p63, %p64
      %p66 = scmp.ne.s32.totalorder %s57, %s58
      %p67 = scmp.eq.s32.totalorder %s26, 0
      %p68 = por %p66, %p67
      %p69 = scmp.ne.s32.totalorder %s57, %s58
      %p70 = scmp.eq.s32.totalorder %s27, 1
      %p71 = por %p69, %p70
      %p73 = scmp.ne.s32.totalorder %s58, %s72
      %p74 = scmp.eq.s32.totalorder %s27, 0
      %p75 = por %p73, %p74
      %s77 = sadd.s32 %s76, 1
      %p80 = scmp.eq.s32.totalorder %s21, 1
      %p81 = scmp.ne.s32.totalorder %s76, %s78
      %p82 = scmp.eq.s32.totalorder %s21, 0
      %p83 = por %p81, %p82
      %p84 = scmp.ne.s32.totalorder %s76, %s78
      %p85 = scmp.eq.s32.totalorder %s26, 1
      %p86 = por %p84, %p85
      %p87 = scmp.ne.s32.totalorder %s78, %s79
      %p88 = scmp.eq.s32.totalorder %s26, 0
      %p89 = por %p87, %p88
      %p90 = scmp.ne.s32.totalorder %s78, %s79
      %p91 = scmp.eq.s32.totalorder %s27, 1
      %p92 = por %p90, %p91
      %p94 = scmp.ne.s32.totalorder %s79, %s93
      %p95 = scmp.eq.s32.totalorder %s27, 0
      %p96 = por %p94, %p95
      %s98 = sadd.s32 %s97, 1
      %p101 = scmp.eq.s32.totalorder %s21, 1
      %p102 = scmp.ne.s32.totalorder %s97, %s99
      %p103 = scmp.eq.s32.totalorder %s21, 0
      %p104 = por %p102, %p103
      %p105 = scmp.ne.s32.totalorder %s97, %s99
      %p106 = scmp.eq.s32.totalorder %s26, 1
      %p107 = por %p105, %p106
      %p108 = scmp.ne.s32.totalorder %s99, %s100
      %p109 = scmp.eq.s32.totalorder %s26, 0
      %p110 = por %p108, %p109
      %p111 = scmp.ne.s32.totalorder %s99, %s100
      %p112 = scmp.eq.s32.totalorder %s27, 1
      %p113 = por %p111, %p112
      %p115 = scmp.ne.s32.totalorder %s100, %s114
      %p116 = scmp.eq.s32.totalorder %s27, 0
      %p117 = por %p115, %p116
      %s119 = sadd.s32 %s118, 1
      %p122 = scmp.eq.s32.totalorder %s21, 1
      %p123 = scmp.ne.s32.totalorder %s118, %s120
      %p124 = scmp.eq.s32.totalorder %s21, 0
      %p125 = por %p123, %p124
      %p126 = scmp.ne.s32.totalorder %s118, %s120
      %p127 = scmp.eq.s32.totalorder %s26, 1
      %p128 = por %p126, %p127
      %p129 = scmp.ne.s32.totalorder %s120, %s121
      %p130 = scmp.eq.s32.totalorder %s26, 0
      %p131 = por %p129, %p130
      %p132 = scmp.ne.s32.totalorder %s120, %s121
      %p133 = scmp.eq.s32.totalorder %s27, 1
      %p134 = por %p132, %p133
      %p136 = scmp.ne.s32.totalorder %s121, %s135
      %p137 = scmp.eq.s32.totalorder %s27, 0
      %p138 = por %p136, %p137
      %s140 = sadd.s32 %s139, 1
      %p143 = scmp.eq.s32.totalorder %s21, 1
      %p144 = scmp.ne.s32.totalorder %s139, %s141
      %p145 = scmp.eq.s32.totalorder %s21, 0
      %p146 = por %p144, %p145
      %p147 = scmp.ne.s32.totalorder %s139, %s141
      %p148 = scmp.eq.s32.totalorder %s26, 1
      %p149 = por %p147, %p148
      %p150 = scmp.ne.s32.totalorder %s141, %s142
      %p151 = scmp.eq.s32.totalorder %s26, 0
      %p152 = por %p150, %p151
      %p153 = scmp.ne.s32.totalorder %s141, %s142
      %p154 = scmp.eq.s32.totalorder %s27, 1
      %p155 = por %p153, %p154
      %p157 = scmp.ne.s32.totalorder %s142, %s156
      %p158 = scmp.eq.s32.totalorder %s27, 0
      %p159 = por %p157, %p158
      %s161 = sadd.s32 %s160, 1
      %p164 = scmp.eq.s32.totalorder %s21, 1
      %p165 = scmp.ne.s32.totalorder %s160, %s162
      %p166 = scmp.eq.s32.totalorder %s21, 0
      %p167 = por %p165, %p166
      %p168 = scmp.ne.s32.totalorder %s160, %s162
      %p169 = scmp.eq.s32.totalorder %s26, 1
      %p170 = por %p168, %p169
      %p171 = scmp.ne.s32.totalorder %s162, %s163
      %p172 = scmp.eq.s32.totalorder %s26, 0
      %p173 = por %p171, %p172
      %p174 = scmp.ne.s32.totalorder %s162, %s163
      %p175 = scmp.eq.s32.totalorder %s27, 1
      %p176 = por %p174, %p175
      %p178 = scmp.ne.s32.totalorder %s163, %s177
      %p179 = scmp.eq.s32.totalorder %s27, 0
      %p180 = por %p178, %p179
      %s181 = ssub.s32 %s21, %s28
      %p182 = scmp.eq.s32.totalorder %s181, 0
      %s184 = sadd.s32 %s183, 1
      %s185 = scalar_select %p182, %s183, %s184
      %p188 = pneg %p182
      %p189 = scmp.eq.s32.totalorder %s21, 1
      %p190 = por %p188, %p189
      %p191 = scmp.ne.s32.totalorder %s183, %s186
      %p192 = scmp.eq.s32.totalorder %s21, 0
      %p193 = por %p191, %p192
      %p194 = scmp.ne.s32.totalorder %s183, %s186
      %p195 = scmp.eq.s32.totalorder %s26, 1
      %p196 = por %p194, %p195
      %p197 = scmp.ne.s32.totalorder %s186, %s187
      %p198 = scmp.eq.s32.totalorder %s26, 0
      %p199 = por %p197, %p198
      %p200 = scmp.ne.s32.totalorder %s186, %s187
      %p201 = scmp.eq.s32.totalorder %s27, 1
      %p202 = por %p200, %p201
      %p204 = scmp.ne.s32.totalorder %s187, %s203
      %p205 = scmp.eq.s32.totalorder %s27, 0
      %p206 = por %p204, %p205
      %p207 = scmp.le.s32.totalorder 1, %s21
      %p208 = scmp.lt.s32.totalorder %s21, 3
      %p209 = pnand %p207, %p208
      %p210 = pneg %p209
      // Predicated region
      $region9: #{tpu_custom_call.1} parent=5 // pred_check
        _
      $region10: #{tpu_custom_call.1} parent=5 // pred_check_branch
        %212 = sbr.rel (%p209) target = $region12
      $region11: #{tpu_custom_call.1} parent=5 // pred_region
        %s213 = ssub.s32 %s21, 1
        // Predicated region
        $region13: #{tpu_custom_call.1} parent=11 // pred_check
          %p214 = pneg %p68
        $region14: #{tpu_custom_call.1} parent=11 // pred_check_branch
          %216 = sbr.rel (%p214) target = $region16
        $region15: #{tpu_custom_call.1} parent=11 // pred_region
          _
        $region16: #{tpu_custom_call.1} parent=11 // pred_fallthru
          _
        // Predicated region
        $region17: #{tpu_custom_call.1} parent=11 // pred_check
          %p217 = pneg %p89
        $region18: #{tpu_custom_call.1} parent=11 // pred_check_branch
          %219 = sbr.rel (%p217) target = $region20
        $region19: #{tpu_custom_call.1} parent=11 // pred_region
          %s221 = ssub.s32 256, 256
          %222 = vsyncadd [#allocation6], %s221
          %s223 = sshll.u32 [#allocation5], 4
          %s224 = int_to_ptr.vmem [resolvable:$true] %s223
          %229 = dma.hbm_to_vmem [thread:$0]  %s2, 256, %s224, [#allocation6], 64, 64, 4
        $region20: #{tpu_custom_call.1} parent=11 // pred_fallthru
          _
        // Predicated region
        $region21: #{tpu_custom_call.1} parent=11 // pred_check
          %p230 = pneg %p110
        $region22: #{tpu_custom_call.1} parent=11 // pred_check_branch
          %232 = sbr.rel (%p230) target = $region24
        $region23: #{tpu_custom_call.1} parent=11 // pred_region
          %s234 = ssub.s32 256, 256
          %235 = vsyncadd [#allocation6], %s234
          %s236 = sshll.u32 [#allocation7], 4
          %s237 = int_to_ptr.vmem [resolvable:$true] %s236
          %242 = dma.hbm_to_vmem [thread:$0]  %s3, 256, %s237, [#allocation6], 64, 64, 4
        $region24: #{tpu_custom_call.1} parent=11 // pred_fallthru
          _
        // Predicated region
        $region25: #{tpu_custom_call.1} parent=11 // pred_check
          %p243 = pneg %p131
        $region26: #{tpu_custom_call.1} parent=11 // pred_check_branch
          %245 = sbr.rel (%p243) target = $region28
        $region27: #{tpu_custom_call.1} parent=11 // pred_region
          %s247 = ssub.s32 256, 256
          %248 = vsyncadd [#allocation9], %s247
          %s249 = sshll.u32 [#allocation8], 4
          %s250 = int_to_ptr.vmem [resolvable:$true] %s249
          %255 = dma.hbm_to_vmem [thread:$0]  %s4, 256, %s250, [#allocation9], 64, 64, 4
        $region28: #{tpu_custom_call.1} parent=11 // pred_fallthru
          _
        // Predicated region
        $region29: #{tpu_custom_call.1} parent=11 // pred_check
          %p256 = pneg %p152
        $region30: #{tpu_custom_call.1} parent=11 // pred_check_branch
          %258 = sbr.rel (%p256) target = $region32
        $region31: #{tpu_custom_call.1} parent=11 // pred_region
          _
        $region32: #{tpu_custom_call.1} parent=11 // pred_fallthru
          _
        // Predicated region
        $region33: #{tpu_custom_call.1} parent=11 // pred_check
          %p259 = pneg %p173
        $region34: #{tpu_custom_call.1} parent=11 // pred_check_branch
          %261 = sbr.rel (%p259) target = $region36
        $region35: #{tpu_custom_call.1} parent=11 // pred_region
          _
        $region36: #{tpu_custom_call.1} parent=11 // pred_fallthru
          _
      $region12: #{tpu_custom_call.1} parent=5 // pred_fallthru
        _
      %p262 = scmp.lt.s32.totalorder %s21, 2
      // Predicated region
      $region37: #{tpu_custom_call.1} parent=5 // pred_check
        %p263 = pneg %p262
      $region38: #{tpu_custom_call.1} parent=5 // pred_check_branch
        %265 = sbr.rel (%p263) target = $region40
      $region39: #{tpu_custom_call.1} parent=5 // pred_region
        // Predicated region
        $region41: #{tpu_custom_call.1} parent=39 // pred_check
          %p266 = pneg %p41
        $region42: #{tpu_custom_call.1} parent=39 // pred_check_branch
          %268 = sbr.rel (%p266) target = $region44
        $region43: #{tpu_custom_call.1} parent=39 // pred_region
          %s269 = sand.u32 %s31, 1
          %s270 = scalar_lea.sflag [#allocation3], %s269
          %s271 = sand.u32 %s31, 1
          %s272 = smul.addr %s271, 8
          %s273 = scalar_lea.vmem [#allocation2], %s272
          %s275 = ssub.s32 128, 128
          %276 = vsyncadd %s270, %s275
          %s277 = smul.addr %s21, 128
          %s278 = scalar_lea.hbm %s0, %s277
          %s280 = sshll.u32 %s273, 4
          %s281 = int_to_ptr.vmem [resolvable:$true] %s280
          %283 = dma.hbm_to_vmem [thread:$0]  %s278, 128, %s281, %s270
        $region44: #{tpu_custom_call.1} parent=39 // pred_fallthru
          _
      $region40: #{tpu_custom_call.1} parent=5 // pred_fallthru
        _
      %p284 = scmp.le.s32.totalorder 1, %s21
      %p285 = scmp.lt.s32.totalorder %s21, 3
      %p286 = pnand %p284, %p285
      %p287 = pneg %p286
      // Predicated region
      $region45: #{tpu_custom_call.1} parent=5 // pred_check
        _
      $region46: #{tpu_custom_call.1} parent=5 // pred_check_branch
        %289 = sbr.rel (%p286) target = $region48
      $region47: #{tpu_custom_call.1} parent=5 // pred_region
        %s290 = ssub.s32 %s21, 1
        %s291 = sand.u32 %s34, 1
        %s292 = scalar_lea.sflag [#allocation3], %s291
        %s293 = sand.u32 %s34, 1
        %s294 = smul.addr %s293, 8
        %s295 = scalar_lea.vmem [#allocation2], %s294
        // Predicated region
        $region49: #{tpu_custom_call.1} parent=47 // pred_check
          %p296 = pneg %p47
        $region50: #{tpu_custom_call.1} parent=47 // pred_check_branch
          %298 = sbr.rel (%p296) target = $region52
        $region51: #{tpu_custom_call.1} parent=47 // pred_region
          %299 = dma.done %s292, 128
        $region52: #{tpu_custom_call.1} parent=47 // pred_fallthru
          _
        // Predicated region
        $region53: #{tpu_custom_call.1} parent=47 // pred_check
          %p300 = pneg %p89
        $region54: #{tpu_custom_call.1} parent=47 // pred_check_branch
          %302 = sbr.rel (%p300) target = $region56
        $region55: #{tpu_custom_call.1} parent=47 // pred_region
          %303 = dma.done [#allocation6], 256
        $region56: #{tpu_custom_call.1} parent=47 // pred_fallthru
          _
        // Predicated region
        $region57: #{tpu_custom_call.1} parent=47 // pred_check
          %p304 = pneg %p110
        $region58: #{tpu_custom_call.1} parent=47 // pred_check_branch
          %306 = sbr.rel (%p304) target = $region60
        $region59: #{tpu_custom_call.1} parent=47 // pred_region
          %307 = dma.done [#allocation6], 256
        $region60: #{tpu_custom_call.1} parent=47 // pred_fallthru
          _
        // Predicated region
        $region61: #{tpu_custom_call.1} parent=47 // pred_check
          %p308 = pneg %p131
        $region62: #{tpu_custom_call.1} parent=47 // pred_check_branch
          %310 = sbr.rel (%p308) target = $region64
        $region63: #{tpu_custom_call.1} parent=47 // pred_region
          %311 = dma.done [#allocation9], 256
        $region64: #{tpu_custom_call.1} parent=47 // pred_fallthru
          _
        %s312 = sand.u32 %s34, 1
        %s313 = scalar_lea.sflag [#allocation3], %s312
        %s314 = sand.u32 %s34, 1
        %s315 = smul.addr %s314, 8
        %s316 = scalar_lea.vmem [#allocation2], %s315
        %p317 = pneg %p47
        %p318 = pneg %p44
        %p319 = pneg %p68
        %p320 = pneg %p65
        %p321 = pneg %p89
        %p322 = pneg %p86
        %p323 = pneg %p110
        %p324 = pneg %p107
        %p325 = pneg %p131
        %p326 = pneg %p128
        %p327 = pneg %p152
        %p328 = pneg %p149
        %p329 = pneg %p173
        %p330 = pneg %p170
        %p331 = pneg %p199
        %p332 = pneg %p196
        %s333 = sand.u32 %s186, 1
        %s334 = scalar_lea.sflag [#allocation4], %s333
        %s335 = sand.u32 %s186, 1
        %s336 = smul.addr %s335, 8
        %s337 = scalar_lea.vmem [#allocation10], %s336
        %v341 = vld [vmem:[%s295] sm:$0xff]
        %v342 = vmul.f32 %v341, %v341
        %vm343 = vcmask 261120
        %v344 = vsel %vm343, %v342, 0.0
        %345 = vadd.xlane.f32.xlu0 %v344
        %v346 = vpop.xlane.xlu0 %345
        %v347 = vadd.f32 %v346, 1e-24
        %v348 = vrsqrt.pop %v347
        %v349 = vmul.f32 %v341, %v348
        %v350 = vld [vmem:[%s1] sm:$0x1]
        %v352 = vlaneseq
        %v353 = vshrl.u32 %v352, 7
        %v354 = vsub.s32 0, %v353
        %v355 = vrot.slane %v350, %v354
        %v357 = vmul.f32 %v349, %v355
        %v358 = vpack.c.bf16 %v357, %v357
        %v359 = vld [vmem:[#allocation5] sm:$0xf]
        %v360 = vld [vmem:[#allocation5 + $0x4] sm:$0xf]
        %v361 = vld [vmem:[#allocation5 + $0x8] sm:$0xf]
        %v362 = vld [vmem:[#allocation5 + $0xc] sm:$0xf]
        %v367 = vunpack.c.l.b16 %v359
        %v368 = vunpack.c.l.b16 %v360
        %v369 = vunpack.c.l.b16 %v361
        %v370 = vunpack.c.l.b16 %v362
        %v371 = vpack.c.b16 %v368, %v367
        %v372 = vpack.c.b16 %v370, %v369
        %v376 = vsel %vm343, %v358, 0
        %378 = vmatprep.subr.bf16.mxu0 0
        %379 = vmatpush1.bf16.msra.mxu0 %v371
        %380 = vmatprep.subr.bf16.mxu0 0
        %381 = vmatpush1.bf16.msra.mxu0 %v372
        %382 = vmatprep.subr.bf16.mxu0 0
        %383 = vmatpush1.bf16.msra.mxu0 0
        %384 = vmatprep.subr.bf16.mxu0 0
        %385 = vmatpush1.bf16.msra.mxu0 0
        %386 = vmatprep.subr.bf16.mxu0 0
        %387 = vmatpush1.bf16.msra.mxu0 0
        %388 = vmatprep.subr.bf16.mxu0 0
        %389 = vmatpush1.bf16.msra.mxu0 0
        %390 = vmatprep.subr.bf16.mxu0 0
        %391 = vmatpush1.bf16.msra.mxu0 0
        %392 = vmatprep.subr.bf16.mxu0 0
        %393 = vmatpush1.bf16.msra.mxu0 0
        %394 = vmatprep.subr.bf16.mxu0 0
        %395 = vmatpush1.bf16.msra.mxu0 0
        %396 = vmatprep.subr.bf16.mxu0 0
        %397 = vmatpush1.bf16.msra.mxu0 0
        %398 = vmatprep.subr.bf16.mxu0 0
        %399 = vmatpush1.bf16.msra.mxu0 0
        %400 = vmatprep.subr.bf16.mxu0 0
        %401 = vmatpush1.bf16.msra.mxu0 0
        %402 = vmatprep.subr.bf16.mxu0 0
        %403 = vmatpush1.bf16.msra.mxu0 0
        %404 = vmatprep.subr.bf16.mxu0 0
        %405 = vmatpush1.bf16.msra.mxu0 0
        %406 = vmatprep.subr.bf16.mxu0 0
        %407 = vmatpush1.bf16.msra.mxu0 0
        %408 = vmatprep.subr.bf16.mxu0 0
        %409 = vmatpush1.bf16.msra.mxu0 0
        %410 = vmatprep.mubr.bf16.mxu0 0
        %411 = vmatmul.mubr.bf16.gmra.mrb[0].mxu0 %v376
        %v412 = vpop.f32.mrb[0].mxu0
        %v413 = vadd.f32 0.0, %v412
        %v414 = vpop.f32.mrb[0].mxu0
        %v415 = vpop.f32.mrb[0].mxu0
        %v416 = vpop.f32.mrb[0].mxu0
        %417 = vdwg.mxu0
        %v418 = vld [vmem:[#allocation7] sm:$0xf]
        %v419 = vld [vmem:[#allocation7 + $0x4] sm:$0xf]
        %v420 = vld [vmem:[#allocation7 + $0x8] sm:$0xf]
        %v421 = vld [vmem:[#allocation7 + $0xc] sm:$0xf]
        %v426 = vunpack.c.l.b16 %v418
        %v427 = vunpack.c.l.b16 %v419
        %v428 = vunpack.c.l.b16 %v420
        %v429 = vunpack.c.l.b16 %v421
        %v430 = vpack.c.b16 %v427, %v426
        %v431 = vpack.c.b16 %v429, %v428
        %434 = vmatprep.subr.bf16.mxu0 0
        %435 = vmatpush1.bf16.msra.mxu0 %v430
        %436 = vmatprep.subr.bf16.mxu0 0
        %437 = vmatpush1.bf16.msra.mxu0 %v431
        %438 = vmatprep.subr.bf16.mxu0 0
        %439 = vmatpush1.bf16.msra.mxu0 0
        %440 = vmatprep.subr.bf16.mxu0 0
        %441 = vmatpush1.bf16.msra.mxu0 0
        %442 = vmatprep.subr.bf16.mxu0 0
        %443 = vmatpush1.bf16.msra.mxu0 0
        %444 = vmatprep.subr.bf16.mxu0 0
        %445 = vmatpush1.bf16.msra.mxu0 0
        %446 = vmatprep.subr.bf16.mxu0 0
        %447 = vmatpush1.bf16.msra.mxu0 0
        %448 = vmatprep.subr.bf16.mxu0 0
        %449 = vmatpush1.bf16.msra.mxu0 0
        %450 = vmatprep.subr.bf16.mxu0 0
        %451 = vmatpush1.bf16.msra.mxu0 0
        %452 = vmatprep.subr.bf16.mxu0 0
        %453 = vmatpush1.bf16.msra.mxu0 0
        %454 = vmatprep.subr.bf16.mxu0 0
        %455 = vmatpush1.bf16.msra.mxu0 0
        %456 = vmatprep.subr.bf16.mxu0 0
        %457 = vmatpush1.bf16.msra.mxu0 0
        %458 = vmatprep.subr.bf16.mxu0 0
        %459 = vmatpush1.bf16.msra.mxu0 0
        %460 = vmatprep.subr.bf16.mxu0 0
        %461 = vmatpush1.bf16.msra.mxu0 0
        %462 = vmatprep.subr.bf16.mxu0 0
        %463 = vmatpush1.bf16.msra.mxu0 0
        %464 = vmatprep.subr.bf16.mxu0 0
        %465 = vmatpush1.bf16.msra.mxu0 0
        %466 = vmatprep.mubr.bf16.mxu0 0
        %467 = vmatmul.mubr.bf16.gmra.mrb[0].mxu0 %v376
        %v468 = vpop.f32.mrb[0].mxu0
        %v469 = vadd.f32 0.0, %v468
        %v470 = vpop.f32.mrb[0].mxu0
        %v471 = vpop.f32.mrb[0].mxu0
        %v472 = vpop.f32.mrb[0].mxu0
        %473 = vdwg.mxu0
        %v474 = vpack.c.bf16 %v413, %v413
        %v475 = vpack.c.bf16 %v469, %v469
        %v476 = vld [vmem:[%s5] sm:$0x3]
        %v477 = vld [vmem:[%s6] sm:$0x3]
        %v478 = vlaneseq
        %v479 = vshrl.u32 %v478, 7
        %v480 = vlaneseq
        %v481 = vand.u32 %v480, 127
        %vm482 = vcmp.eq.s32.totalorder %v479, %v481
        %v483 = vmul.f32 %v413, %v413
        %vm484 = vcmask 130048
        %v485 = vsel %vm484, %v483, 0.0
        %486 = vadd.xlane.f32.xlu0 %v485
        %v487 = vpop.xlane.xlu0 %486
        %v489 = vsel %vm484, %v474, 0
        %491 = vmatprep.subr.bf16.mxu0 0
        %492 = vmatpush1.bf16.xpose.msra.mxu0 %v489
        %493 = vmatprep.subr.bf16.mxu0 0
        %494 = vmatpush1.bf16.xpose.msra.mxu0 0
        %495 = vmatprep.subr.bf16.mxu0 0
        %496 = vmatpush1.bf16.xpose.msra.mxu0 0
        %497 = vmatprep.subr.bf16.mxu0 0
        %498 = vmatpush1.bf16.xpose.msra.mxu0 0
        %499 = vmatprep.subr.bf16.mxu0 0
        %500 = vmatpush1.bf16.xpose.msra.mxu0 0
        %501 = vmatprep.subr.bf16.mxu0 0
        %502 = vmatpush1.bf16.xpose.msra.mxu0 0
        %503 = vmatprep.subr.bf16.mxu0 0
        %504 = vmatpush1.bf16.xpose.msra.mxu0 0
        %505 = vmatprep.subr.bf16.mxu0 0
        %506 = vmatpush1.bf16.xpose.msra.mxu0 0
        %507 = vmatprep.subr.bf16.mxu0 0
        %508 = vmatpush1.bf16.xpose.msra.mxu0 0
        %509 = vmatprep.subr.bf16.mxu0 0
        %510 = vmatpush1.bf16.xpose.msra.mxu0 0
        %511 = vmatprep.subr.bf16.mxu0 0
        %512 = vmatpush1.bf16.xpose.msra.mxu0 0
        %513 = vmatprep.subr.bf16.mxu0 0
        %514 = vmatpush1.bf16.xpose.msra.mxu0 0
        %515 = vmatprep.subr.bf16.mxu0 0
        %516 = vmatpush1.bf16.xpose.msra.mxu0 0
        %517 = vmatprep.subr.bf16.mxu0 0
        %518 = vmatpush1.bf16.xpose.msra.mxu0 0
        %519 = vmatprep.subr.bf16.mxu0 0
        %520 = vmatpush1.bf16.xpose.msra.mxu0 0
        %521 = vmatprep.subr.bf16.mxu0 0
        %522 = vmatpush1.bf16.xpose.msra.mxu0 0
        %523 = vmatprep.mubr.bf16.mxu0 0
        %524 = vmatmul.mubr.bf16.gmra.mrb[0].mxu0 %v489
        %v525 = vpop.f32.mrb[0].mxu0
        %v526 = vadd.f32 0.0, %v525
        %v527 = vpop.f32.mrb[0].mxu0
        %v528 = vpop.f32.mrb[0].mxu0
        %v529 = vpop.f32.mrb[0].mxu0
        %530 = vdwg.mxu0
        %531 = vxpose.xlu0.b32.start [1/16] %v487, 128
        %532 = vxpose.xlu0.b32.cont [2/16] 0.0, 128
        %533 = vxpose.xlu0.b32.cont [3/16] 0.0, 128
        %534 = vxpose.xlu0.b32.cont [4/16] 0.0, 128
        %535 = vxpose.xlu0.b32.cont [5/16] 0.0, 128
        %536 = vxpose.xlu0.b32.cont [6/16] 0.0, 128
        %537 = vxpose.xlu0.b32.cont [7/16] 0.0, 128
        %538 = vxpose.xlu0.b32.cont [8/16] 0.0, 128
        %539 = vxpose.xlu0.b32.cont [9/16] 0.0, 128
        %540 = vxpose.xlu0.b32.cont [10/16] 0.0, 128
        %541 = vxpose.xlu0.b32.cont [11/16] 0.0, 128
        %542 = vxpose.xlu0.b32.cont [12/16] 0.0, 128
        %543 = vxpose.xlu0.b32.cont [13/16] 0.0, 128
        %544 = vxpose.xlu0.b32.cont [14/16] 0.0, 128
        %545 = vxpose.xlu0.b32.cont [15/16] 0.0, 128
        %546 = vxpose.xlu0.b32.end [16/16] 0.0, 128
        %v547 = vpop.trf.xlu0
        %v548 = vpop.trf.xlu0
        %v549 = vpop.trf.xlu0
        %v550 = vpop.trf.xlu0
        %v551 = vpop.trf.xlu0
        %v552 = vpop.trf.xlu0
        %v553 = vpop.trf.xlu0
        %v554 = vpop.trf.xlu0
        %v555 = vpop.trf.xlu0
        %v556 = vpop.trf.xlu0
        %v557 = vpop.trf.xlu0
        %v558 = vpop.trf.xlu0
        %v559 = vpop.trf.xlu0
        %v560 = vpop.trf.xlu0
        %v561 = vpop.trf.xlu0
        %v562 = vpop.trf.xlu0
        %v563 = vlaneseq
        %v564 = vshrl.u32 %v563, 7
        %v565 = vsub.s32 0, %v564
        %v566 = vrot.slane %v547, %v565
        %v567 = vadd.f32 %v487, %v566
        %v568 = vmul.f32 %v526, 2.0
        %v569 = vsub.f32 %v567, %v568
        %v570 = vmax.f32 %v569, 0.0
        %v571 = vpack.c.bf16 %v570, %v570
        %v572 = vrsqrt.bf16.pop %v571
        %v573 = vmul.bf16 %v571, %v572
        %vm575 = vcmp.eq.bf16.partialorder %v571, 2139127680
        %v576 = vsel %vm575, %v571, %v573
        %vm578 = vcmp.eq.bf16.partialorder %v571, 0
        %v579 = vand.u32 2147450879, 0
        %v580 = vand.u32 %v571, 2147516416
        %v581 = vor.u32 %v579, %v580
        %v582 = vsel %vm578, %v581, %v576
        %v583 = vsub.bf16 0, %v582
        %vm584 = vmpackc.low %vm482, %vm482
        %v585 = vsel %vm584, 3267936968, %v583
        %v586 = vlaneseq
        %v587 = vshrl.u32 %v586, 7
        %v588 = vsub.s32 0, %v587
        %v589 = vrot.slane %v476, %v588
        %v590 = vsub.f32 %v413, %v589
        %v591 = vmul.f32 %v590, %v590
        %v592 = vsel %vm484, %v591, 0.0
        %593 = vadd.xlane.f32.xlu0 %v592
        %v594 = vpop.xlane.xlu0 %593
        %v595 = vmax.f32 %v594, 0.0
        %v596 = vrsqrt.pop %v595
        %v597 = vmul.f32 %v595, %v596
        %vm598 = vcmp.eq.f32.partialorder %v595, inf
        %v599 = vsel %vm598, %v595, %v597
        %vm600 = vcmp.eq.f32.partialorder %v595, 0.0
        %v601 = vand.u32 %v595, 2147483648
        %v602 = vsel %vm600, %v601, %v599
        %v603 = vsub.f32 0.0, %v602
        %vm604 = vcmask 60416
        %v607 = vsel %vm604, %v585, 4286644096
        %609 = vmax.xlane.bf16.xlu0 %v607
        %v610 = vpop.xlane.xlu0 %609
        %v611 = vpack.c.bf16 %v603, %v603
        %v612 = vmax.bf16 %v610, %v611
        %v613 = vsub.bf16 %v585, %v612
        %v615 = vmul.bf16 %v613, 1069105081
        %v616 = vpow.bf16.pop %v615
        %v617 = vunpack.c.l.bf16 %v612
        %v618 = vsub.f32 %v603, %v617
        %v619 = vmul.f32 %v618, 1.442695
        %v620 = vpow.pop %v619
        %v621 = vunpack.c.l.bf16 %v616
        %vm622 = vcmask 64512
        %v623 = vsel %vm622, %v621, 0.0
        %624 = vadd.xlane.f32.xlu0 %v623
        %v625 = vpop.xlane.xlu0 %624
        %v626 = vadd.f32 %v625, %v620
        %v627 = vrcp.pop %v626
        %v628 = vmul.f32 1.0, %v627
        %v629 = vlaneseq
        %v630 = vshrl.u32 %v629, 7
        %v631 = vsub.s32 0, %v630
        %v632 = vrot.slane %v477, %v631
        %v633 = vmul.f32 %v620, %v632
        %v635 = vsel %vm622, %v616, 0
        %vm637 = vcmask 1043456
        %v639 = vsel %vm637, %v475, 0
        %641 = vmatprep.subr.bf16.mxu0 0
        %642 = vmatpush1.bf16.msra.mxu0 %v639
        %643 = vmatprep.subr.bf16.mxu0 0
        %644 = vmatpush1.bf16.msra.mxu0 0
        %645 = vmatprep.subr.bf16.mxu0 0
        %646 = vmatpush1.bf16.msra.mxu0 0
        %647 = vmatprep.subr.bf16.mxu0 0
        %648 = vmatpush1.bf16.msra.mxu0 0
        %649 = vmatprep.subr.bf16.mxu0 0
        %650 = vmatpush1.bf16.msra.mxu0 0
        %651 = vmatprep.subr.bf16.mxu0 0
        %652 = vmatpush1.bf16.msra.mxu0 0
        %653 = vmatprep.subr.bf16.mxu0 0
        %654 = vmatpush1.bf16.msra.mxu0 0
        %655 = vmatprep.subr.bf16.mxu0 0
        %656 = vmatpush1.bf16.msra.mxu0 0
        %657 = vmatprep.subr.bf16.mxu0 0
        %658 = vmatpush1.bf16.msra.mxu0 0
        %659 = vmatprep.subr.bf16.mxu0 0
        %660 = vmatpush1.bf16.msra.mxu0 0
        %661 = vmatprep.subr.bf16.mxu0 0
        %662 = vmatpush1.bf16.msra.mxu0 0
        %663 = vmatprep.subr.bf16.mxu0 0
        %664 = vmatpush1.bf16.msra.mxu0 0
        %665 = vmatprep.subr.bf16.mxu0 0
        %666 = vmatpush1.bf16.msra.mxu0 0
        %667 = vmatprep.subr.bf16.mxu0 0
        %668 = vmatpush1.bf16.msra.mxu0 0
        %669 = vmatprep.subr.bf16.mxu0 0
        %670 = vmatpush1.bf16.msra.mxu0 0
        %671 = vmatprep.subr.bf16.mxu0 0
        %672 = vmatpush1.bf16.msra.mxu0 0
        %673 = vmatprep.mubr.bf16.mxu0 0
        %674 = vmatmul.mubr.bf16.gmra.mrb[0].mxu0 %v635
        %v675 = vpop.f32.mrb[0].mxu0
        %v676 = vadd.f32 %v633, %v675
        %v677 = vpop.f32.mrb[0].mxu0
        %v678 = vpop.f32.mrb[0].mxu0
        %v679 = vpop.f32.mrb[0].mxu0
        %680 = vdwg.mxu0
        %v681 = vmul.f32 %v676, %v628
        %v682 = vpack.c.bf16 %v681, %v681
        %684 = vrot.lane.b32.xlu0 %v483, 112
        %v685 = vpop.permute.xlu0 %684
        %v687 = vsel %vm484, %v685, 0.0
        %688 = vadd.xlane.f32.xlu0 %v687
        %v689 = vpop.xlane.xlu0 %688
        %691 = vrot.lane.b32.xlu0 %v474, 112
        %v692 = vpop.permute.xlu0 %691
        %v694 = vsel %vm484, %v692, 0
        %696 = vmatprep.subr.bf16.mxu0 0
        %697 = vmatpush1.bf16.xpose.msra.mxu0 %v694
        %698 = vmatprep.subr.bf16.mxu0 0
        %699 = vmatpush1.bf16.xpose.msra.mxu0 0
        %700 = vmatprep.subr.bf16.mxu0 0
        %701 = vmatpush1.bf16.xpose.msra.mxu0 0
        %702 = vmatprep.subr.bf16.mxu0 0
        %703 = vmatpush1.bf16.xpose.msra.mxu0 0
        %704 = vmatprep.subr.bf16.mxu0 0
        %705 = vmatpush1.bf16.xpose.msra.mxu0 0
        %706 = vmatprep.subr.bf16.mxu0 0
        %707 = vmatpush1.bf16.xpose.msra.mxu0 0
        %708 = vmatprep.subr.bf16.mxu0 0
        %709 = vmatpush1.bf16.xpose.msra.mxu0 0
        %710 = vmatprep.subr.bf16.mxu0 0
        %711 = vmatpush1.bf16.xpose.msra.mxu0 0
        %712 = vmatprep.subr.bf16.mxu0 0
        %713 = vmatpush1.bf16.xpose.msra.mxu0 0
        %714 = vmatprep.subr.bf16.mxu0 0
        %715 = vmatpush1.bf16.xpose.msra.mxu0 0
        %716 = vmatprep.subr.bf16.mxu0 0
        %717 = vmatpush1.bf16.xpose.msra.mxu0 0
        %718 = vmatprep.subr.bf16.mxu0 0
        %719 = vmatpush1.bf16.xpose.msra.mxu0 0
        %720 = vmatprep.subr.bf16.mxu0 0
        %721 = vmatpush1.bf16.xpose.msra.mxu0 0
        %722 = vmatprep.subr.bf16.mxu0 0
        %723 = vmatpush1.bf16.xpose.msra.mxu0 0
        %724 = vmatprep.subr.bf16.mxu0 0
        %725 = vmatpush1.bf16.xpose.msra.mxu0 0
        %726 = vmatprep.subr.bf16.mxu0 0
        %727 = vmatpush1.bf16.xpose.msra.mxu0 0
        %728 = vmatprep.mubr.bf16.mxu0 0
        %729 = vmatmul.mubr.bf16.gmra.mrb[0].mxu0 %v694
        %v730 = vpop.f32.mrb[0].mxu0
        %v731 = vadd.f32 0.0, %v730
        %v732 = vpop.f32.mrb[0].mxu0
        %v733 = vpop.f32.mrb[0].mxu0
        %v734 = vpop.f32.mrb[0].mxu0
        %735 = vdwg.mxu0
        %736 = vxpose.xlu0.b32.start [1/16] %v689, 128
        %737 = vxpose.xlu0.b32.cont [2/16] 0.0, 128
        %738 = vxpose.xlu0.b32.cont [3/16] 0.0, 128
        %739 = vxpose.xlu0.b32.cont [4/16] 0.0, 128
        %740 = vxpose.xlu0.b32.cont [5/16] 0.0, 128
        %741 = vxpose.xlu0.b32.cont [6/16] 0.0, 128
        %742 = vxpose.xlu0.b32.cont [7/16] 0.0, 128
        %743 = vxpose.xlu0.b32.cont [8/16] 0.0, 128
        %744 = vxpose.xlu0.b32.cont [9/16] 0.0, 128
        %745 = vxpose.xlu0.b32.cont [10/16] 0.0, 128
        %746 = vxpose.xlu0.b32.cont [11/16] 0.0, 128
        %747 = vxpose.xlu0.b32.cont [12/16] 0.0, 128
        %748 = vxpose.xlu0.b32.cont [13/16] 0.0, 128
        %749 = vxpose.xlu0.b32.cont [14/16] 0.0, 128
        %750 = vxpose.xlu0.b32.cont [15/16] 0.0, 128
        %751 = vxpose.xlu0.b32.end [16/16] 0.0, 128
        %v752 = vpop.trf.xlu0
        %v753 = vpop.trf.xlu0
        %v754 = vpop.trf.xlu0
        %v755 = vpop.trf.xlu0
        %v756 = vpop.trf.xlu0
        %v757 = vpop.trf.xlu0
        %v758 = vpop.trf.xlu0
        %v759 = vpop.trf.xlu0
        %v760 = vpop.trf.xlu0
        %v761 = vpop.trf.xlu0
        %v762 = vpop.trf.xlu0
        %v763 = vpop.trf.xlu0
        %v764 = vpop.trf.xlu0
        %v765 = vpop.trf.xlu0
        %v766 = vpop.trf.xlu0
        %v767 = vpop.trf.xlu0
        %v768 = vlaneseq
        %v769 = vshrl.u32 %v768, 7
        %v770 = vsub.s32 0, %v769
        %v771 = vrot.slane %v752, %v770
        %v772 = vadd.f32 %v689, %v771
        %v773 = vmul.f32 %v731, 2.0
        %v774 = vsub.f32 %v772, %v773
        %v775 = vmax.f32 %v774, 0.0
        %v776 = vpack.c.bf16 %v775, %v775
        %v777 = vrsqrt.bf16.pop %v776
        %v778 = vmul.bf16 %v776, %v777
        %vm780 = vcmp.eq.bf16.partialorder %v776, 2139127680
        %v781 = vsel %vm780, %v776, %v778
        %vm783 = vcmp.eq.bf16.partialorder %v776, 0
        %v784 = vand.u32 2147450879, 0
        %v785 = vand.u32 %v776, 2147516416
        %v786 = vor.u32 %v784, %v785
        %v787 = vsel %vm783, %v786, %v781
        %v788 = vsub.bf16 0, %v787
        %v789 = vsel %vm584, 3267936968, %v788
        %v790 = vlaneseq
        %v791 = vshrl.u32 %v790, 7
        %v792 = vsub.s32 1, %v791
        %v793 = vrot.slane %v476, %v792
        %795 = vrot.lane.b32.xlu0 %v793, 16
        %v796 = vpop.permute.xlu0 %795
        %v798 = vsub.f32 %v413, %v796
        %v799 = vmul.f32 %v798, %v798
        %801 = vrot.lane.b32.xlu0 %v799, 112
        %v802 = vpop.permute.xlu0 %801
        %v804 = vsel %vm484, %v802, 0.0
        %805 = vadd.xlane.f32.xlu0 %v804
        %v806 = vpop.xlane.xlu0 %805
        %v807 = vmax.f32 %v806, 0.0
        %v808 = vrsqrt.pop %v807
        %v809 = vmul.f32 %v807, %v808
        %vm810 = vcmp.eq.f32.partialorder %v807, inf
        %v811 = vsel %vm810, %v807, %v809
        %vm812 = vcmp.eq.f32.partialorder %v807, 0.0
        %v813 = vand.u32 %v807, 2147483648
        %v814 = vsel %vm812, %v813, %v811
        %v815 = vsub.f32 0.0, %v814
        %v817 = vsel %vm604, %v789, 4286644096
        %819 = vmax.xlane.bf16.xlu0 %v817
        %v820 = vpop.xlane.xlu0 %819
        %v821 = vpack.c.bf16 %v815, %v815
        %v822 = vmax.bf16 %v820, %v821
        %v823 = vsub.bf16 %v789, %v822
        %v825 = vmul.bf16 %v823, 1069105081
        %v826 = vpow.bf16.pop %v825
        %v827 = vunpack.c.l.bf16 %v822
        %v828 = vsub.f32 %v815, %v827
        %v829 = vmul.f32 %v828, 1.442695
        %v830 = vpow.pop %v829
        %v831 = vunpack.c.l.bf16 %v826
        %v832 = vsel %vm622, %v831, 0.0
        %833 = vadd.xlane.f32.xlu0 %v832
        %v834 = vpop.xlane.xlu0 %833
        %v835 = vadd.f32 %v834, %v830
        %v836 = vrcp.pop %v835
        %v837 = vmul.f32 1.0, %v836
        %v838 = vlaneseq
        %v839 = vshrl.u32 %v838, 7
        %v840 = vsub.s32 1, %v839
        %v841 = vrot.slane %v477, %v840
        %v842 = vmul.f32 %v830, %v841
        %844 = vrot.lane.b32.xlu0 %v475, 112
        %v845 = vpop.permute.xlu0 %844
        %v847 = vsel %vm622, %v826, 0
        %v850 = vsel %vm637, %v845, 0
        %852 = vmatprep.subr.bf16.mxu0 0
        %853 = vmatpush1.bf16.msra.mxu0 %v850
        %854 = vmatprep.subr.bf16.mxu0 0
        %855 = vmatpush1.bf16.msra.mxu0 0
        %856 = vmatprep.subr.bf16.mxu0 0
        %857 = vmatpush1.bf16.msra.mxu0 0
        %858 = vmatprep.subr.bf16.mxu0 0
        %859 = vmatpush1.bf16.msra.mxu0 0
        %860 = vmatprep.subr.bf16.mxu0 0
        %861 = vmatpush1.bf16.msra.mxu0 0
        %862 = vmatprep.subr.bf16.mxu0 0
        %863 = vmatpush1.bf16.msra.mxu0 0
        %864 = vmatprep.subr.bf16.mxu0 0
        %865 = vmatpush1.bf16.msra.mxu0 0
        %866 = vmatprep.subr.bf16.mxu0 0
        %867 = vmatpush1.bf16.msra.mxu0 0
        %868 = vmatprep.subr.bf16.mxu0 0
        %869 = vmatpush1.bf16.msra.mxu0 0
        %870 = vmatprep.subr.bf16.mxu0 0
        %871 = vmatpush1.bf16.msra.mxu0 0
        %872 = vmatprep.subr.bf16.mxu0 0
        %873 = vmatpush1.bf16.msra.mxu0 0
        %874 = vmatprep.subr.bf16.mxu0 0
        %875 = vmatpush1.bf16.msra.mxu0 0
        %876 = vmatprep.subr.bf16.mxu0 0
        %877 = vmatpush1.bf16.msra.mxu0 0
        %878 = vmatprep.subr.bf16.mxu0 0
        %879 = vmatpush1.bf16.msra.mxu0 0
        %880 = vmatprep.subr.bf16.mxu0 0
        %881 = vmatpush1.bf16.msra.mxu0 0
        %882 = vmatprep.subr.bf16.mxu0 0
        %883 = vmatpush1.bf16.msra.mxu0 0
        %884 = vmatprep.mubr.bf16.mxu0 0
        %885 = vmatmul.mubr.bf16.gmra.mrb[0].mxu0 %v847
        %v886 = vpop.f32.mrb[0].mxu0
        %v887 = vadd.f32 %v842, %v886
        %v888 = vpop.f32.mrb[0].mxu0
        %v889 = vpop.f32.mrb[0].mxu0
        %v890 = vpop.f32.mrb[0].mxu0
        %891 = vdwg.mxu0
        %v892 = vmul.f32 %v887, %v837
        %v893 = vpack.c.bf16 %v892, %v892
        %895 = vrot.lane.b32.xlu0 %v893, 16
        %v896 = vpop.permute.xlu0 %895
        %v899 = vsel %vm484, %v682, %v896
        %v900 = vld [vmem:[#allocation8] sm:$0xf]
        %v901 = vld [vmem:[#allocation8 + $0x4] sm:$0xf]
        %v902 = vld [vmem:[#allocation8 + $0x8] sm:$0xf]
        %v903 = vld [vmem:[#allocation8 + $0xc] sm:$0xf]
        %v908 = vunpack.c.l.b16 %v900
        %v909 = vunpack.c.l.b16 %v901
        %v910 = vunpack.c.l.b16 %v902
        %v911 = vunpack.c.l.b16 %v903
        %v912 = vpack.c.b16 %v909, %v908
        %v913 = vpack.c.b16 %v911, %v910
        %v916 = vsel %vm343, %v899, 0
        %918 = vmatprep.subr.bf16.mxu0 0
        %919 = vmatpush1.bf16.msra.mxu0 %v912
        %920 = vmatprep.subr.bf16.mxu0 0
        %921 = vmatpush1.bf16.msra.mxu0 %v913
        %922 = vmatprep.subr.bf16.mxu0 0
        %923 = vmatpush1.bf16.msra.mxu0 0
        %924 = vmatprep.subr.bf16.mxu0 0
        %925 = vmatpush1.bf16.msra.mxu0 0
        %926 = vmatprep.subr.bf16.mxu0 0
        %927 = vmatpush1.bf16.msra.mxu0 0
        %928 = vmatprep.subr.bf16.mxu0 0
        %929 = vmatpush1.bf16.msra.mxu0 0
        %930 = vmatprep.subr.bf16.mxu0 0
        %931 = vmatpush1.bf16.msra.mxu0 0
        %932 = vmatprep.subr.bf16.mxu0 0
        %933 = vmatpush1.bf16.msra.mxu0 0
        %934 = vmatprep.subr.bf16.mxu0 0
        %935 = vmatpush1.bf16.msra.mxu0 0
        %936 = vmatprep.subr.bf16.mxu0 0
        %937 = vmatpush1.bf16.msra.mxu0 0
        %938 = vmatprep.subr.bf16.mxu0 0
        %939 = vmatpush1.bf16.msra.mxu0 0
        %940 = vmatprep.subr.bf16.mxu0 0
        %941 = vmatpush1.bf16.msra.mxu0 0
        %942 = vmatprep.subr.bf16.mxu0 0
        %943 = vmatpush1.bf16.msra.mxu0 0
        %944 = vmatprep.subr.bf16.mxu0 0
        %945 = vmatpush1.bf16.msra.mxu0 0
        %946 = vmatprep.subr.bf16.mxu0 0
        %947 = vmatpush1.bf16.msra.mxu0 0
        %948 = vmatprep.subr.bf16.mxu0 0
        %949 = vmatpush1.bf16.msra.mxu0 0
        %950 = vmatprep.mubr.bf16.mxu0 0
        %951 = vmatmul.mubr.bf16.gmra.mrb[0].mxu0 %v916
        %v952 = vpop.f32.mrb[0].mxu0
        %v953 = vadd.f32 0.0, %v952
        %v954 = vpop.f32.mrb[0].mxu0
        %v955 = vpop.f32.mrb[0].mxu0
        %v956 = vpop.f32.mrb[0].mxu0
        %957 = vdwg.mxu0
        %958 = vst.msk [vmem:[%s337] sm:$0xff] %vm343, %v953
        %s959 = sand.u32 %s186, 1
        %s960 = scalar_lea.sflag [#allocation4], %s959
        %s961 = sand.u32 %s186, 1
        %s962 = smul.addr %s961, 8
        %s963 = scalar_lea.vmem [#allocation10], %s962
        // Predicated region
        $region65: #{tpu_custom_call.1} parent=47 // pred_check
          %p964 = pneg %p196
        $region66: #{tpu_custom_call.1} parent=47 // pred_check_branch
          %966 = sbr.rel (%p964) target = $region68
        $region67: #{tpu_custom_call.1} parent=47 // pred_region
          %s968 = ssub.s32 128, 128
          %969 = vsyncadd %s960, %s968
          %s970 = smul.addr %s26, 128
          %s971 = scalar_lea.hbm %s7, %s970
          %s973 = sshll.u32 %s963, 4
          %s974 = int_to_ptr.vmem [resolvable:$true] %s973
          %976 = dma.vmem_to_hbm [thread:$0]  %s974, 128, %s971, %s960
        $region68: #{tpu_custom_call.1} parent=47 // pred_fallthru
          _
      $region48: #{tpu_custom_call.1} parent=5 // pred_fallthru
        _
      %p977 = scmp.le.s32.totalorder 2, %s21
      // Predicated region
      $region69: #{tpu_custom_call.1} parent=5 // pred_check
        %p978 = pneg %p977
      $region70: #{tpu_custom_call.1} parent=5 // pred_check_branch
        %980 = sbr.rel (%p978) target = $region72
      $region71: #{tpu_custom_call.1} parent=5 // pred_region
        %s981 = ssub.s32 %s21, 2
        // Predicated region
        $region73: #{tpu_custom_call.1} parent=71 // pred_check
          %p982 = pneg %p202
        $region74: #{tpu_custom_call.1} parent=71 // pred_check_branch
          %984 = sbr.rel (%p982) target = $region76
        $region75: #{tpu_custom_call.1} parent=71 // pred_region
          %s985 = sand.u32 %s187, 1
          %s986 = scalar_lea.sflag [#allocation4], %s985
          %s987 = sand.u32 %s187, 1
          %s988 = smul.addr %s987, 8
          %s989 = scalar_lea.vmem [#allocation10], %s988
          %990 = dma.done %s986, 128
        $region76: #{tpu_custom_call.1} parent=71 // pred_fallthru
          _
      $region72: #{tpu_custom_call.1} parent=5 // pred_fallthru
        _
    $region6: #{tpu_custom_call.1} parent=1 // loop_footer
      %s25 = sadd.s32 1, %s21
    $region7: #{tpu_custom_call.1} parent=1 // loop_footer_branch
      %20 = sbr.rel target = $region3
    $region8: #{tpu_custom_call.1} parent=1 // loop_exit
      _
    %991 = vsyncpa [#allocation3], 1
    %s992 = scalar_lea.sflag [#allocation3], 1
    %993 = vsyncpa %s992, 1
    %994 = vsyncpa [#allocation6], 1
    %995 = vsyncpa [#allocation9], 1
    %996 = vsyncpa [#allocation4], 1
    %s997 = scalar_lea.sflag [#allocation4], 1
    %998 = vsyncpa %s997, 1

</llo_original>
